<compile_context>
chip_gen: v7x
topology: tpu7x:2x2x1
jax: 0.10.0
libtpu: 0.0.40
codegen_flags: <defaults>
</compile_context>

<pallas_src>
import functools

import jax
import jax.numpy as jnp
from jax.experimental import pallas as pl
from jax.experimental.pallas import tpu as pltpu


def _mlp_kernel(x_ref, wgu_ref, wd_ref, out_ref, acc_ref, *, tile_k):
    ki = pl.program_id(1)

    @pl.when(ki == 0)
    def _():
        acc_ref[...] = jnp.zeros_like(acc_ref)

    x = x_ref[...]                                                      # (tm, H) bf16
    # One wide MXU matmul for gate||up (fused weight tile is [gate_tk | up_tk]).
    gu = jnp.dot(x, wgu_ref[...], preferred_element_type=jnp.float32)   # (tm, 2*tk) f32
    g = gu[:, :tile_k]                                                  # lane-aligned slice
    u = gu[:, tile_k:]
    h = jax.nn.silu(g) * u                                              # (tm, tk) f32 (EUP+VPU)
    acc_ref[...] += jnp.dot(h.astype(wd_ref.dtype), wd_ref[...],
                            preferred_element_type=jnp.float32)         # (tm, H) f32

    @pl.when(ki == pl.num_programs(1) - 1)
    def _():
        out_ref[...] = acc_ref[...].astype(out_ref.dtype)


def prepare_mistral_mlp_weights(w_gate, w_up, w_down, *, tile_k=512,
                                dtype=jnp.bfloat16):
    """One-time (model-load) conversion from the PyTorch [out, in] layout.

    gate/up are transposed to [H, I] and interleaved at tile_k granularity into
    a single fused [H, 2*I] operand (each k-step then needs ONE wide matmul);
    down is transposed to [I, H].
    """
    I, H = w_gate.shape
    assert w_up.shape == (I, H) and w_down.shape == (H, I)
    tile_k = min(tile_k, I)
    assert I % tile_k == 0, "intermediate_size must be divisible by tile_k"
    assert tile_k % 128 == 0, "tile_k must be lane-aligned (multiple of 128)"
    n_k = I // tile_k
    wg = jnp.asarray(w_gate, dtype).T.reshape(H, n_k, tile_k)
    wu = jnp.asarray(w_up, dtype).T.reshape(H, n_k, tile_k)
    w_gu = jnp.concatenate([wg, wu], axis=2).reshape(H, 2 * I)   # per-tile [g|u]
    w_dn = jnp.asarray(w_down, dtype).T                          # (I, H)
    return w_gu, w_dn, tile_k


def mistral_mlp_pallas(x, w_gu, w_dn, *, tile_k, tile_m=256, out_dtype=None):
    """x: [B, S, H]; w_gu: [H, 2*I] fused gate/up; w_dn: [I, H]."""
    B, S, H = x.shape
    I, H2 = w_dn.shape
    assert H2 == H and w_gu.shape == (H, 2 * I)
    assert I % tile_k == 0
    assert H % 128 == 0, "hidden_size must be lane-aligned"

    M = B * S
    tm = min(tile_m, M)
    # Pad rows to a tile multiple only when necessary (shapes are static).
    M_pad = pl.cdiv(M, tm) * tm
    n_m, n_k = M_pad // tm, I // tile_k

    compute_dtype = w_gu.dtype
    out_dtype = out_dtype or x.dtype
    x2d = x.reshape(M, H).astype(compute_dtype)
    if M_pad != M:
        x2d = jnp.pad(x2d, ((0, M_pad - M), (0, 0)))

    # Explicit VMEM budget: double-buffered x / fused gate-up / down tiles,
    # resident output tile, f32 accumulator.  3x headroom, capped below the
    # smallest physical VMEM (v7x: 64 MiB per core).
    bpe = jnp.dtype(compute_dtype).itemsize
    obe = jnp.dtype(out_dtype).itemsize
    vmem_need = (2 * tm * H * bpe            # x tiles (double buffered)
                 + 2 * H * 2 * tile_k * bpe  # fused gate/up weight tiles
                 + 2 * tile_k * H * bpe      # down weight tiles
                 + tm * H * obe              # resident output tile
                 + tm * H * 4)               # f32 accumulator
    vmem_limit = int(min(max(3 * vmem_need, 32 * 1024 * 1024),
                         56 * 1024 * 1024))

    cost = pl.CostEstimate(
        flops=6 * M_pad * I * H,         # three M x I x H matmuls
        transcendentals=M_pad * I,       # exp inside silu
        bytes_accessed=(x2d.size * bpe + w_gu.size * bpe + w_dn.size * bpe
                        + M_pad * H * obe),
    )

    kernel = functools.partial(_mlp_kernel, tile_k=tile_k)

    out2d = pl.pallas_call(
        kernel,
        out_shape=jax.ShapeDtypeStruct((M_pad, H), out_dtype),
        grid_spec=pltpu.PrefetchScalarGridSpec(
            num_scalar_prefetch=0,
            grid=(n_m, n_k),
            in_specs=[
                pl.BlockSpec((tm, H), lambda mi, ki: (mi, 0)),          # x tile
                pl.BlockSpec((H, 2 * tile_k), lambda mi, ki: (0, ki)),  # gate||up
                pl.BlockSpec((tile_k, H), lambda mi, ki: (ki, 0)),      # down
            ],
            out_specs=pl.BlockSpec((tm, H), lambda mi, ki: (mi, 0)),
            scratch_shapes=[pltpu.VMEM((tm, H), jnp.float32)],
        ),
        compiler_params=pltpu.CompilerParams(
            dimension_semantics=("parallel", "arbitrary"),
            vmem_limit_bytes=vmem_limit,
        ),
        cost_estimate=cost,
    )(x2d, w_gu, w_dn)

    if M_pad != M:
        out2d = out2d[:M]
    return out2d.reshape(B, S, H)


def mistral_mlp_ref(x, w_gate, w_up, w_down):
    g = jnp.einsum("bsh,ih->bsi", x, w_gate)
    u = jnp.einsum("bsh,ih->bsi", x, w_up)
    h = jax.nn.silu(g) * u
    return jnp.einsum("bsi,hi->bsh", h, w_down)


if __name__ == "__main__":
    # Small, forward-consistent shapes (lane-aligned so tiling is exercised:
    # 2 M-tiles x 2 K-tiles).
    batch, seq = 2, 128
    hidden_size = 128
    intermediate_size = 512

    key = jax.random.PRNGKey(0)
    kx, kg, ku, kd = jax.random.split(key, 4)

    x = jax.random.normal(kx, (batch, seq, hidden_size), dtype=jnp.float32)
    # PyTorch nn.Linear weight layout: [out_features, in_features], bias=False
    w_gate = jax.random.normal(kg, (intermediate_size, hidden_size), jnp.float32) * 0.05
    w_up   = jax.random.normal(ku, (intermediate_size, hidden_size), jnp.float32) * 0.05
    w_down = jax.random.normal(kd, (hidden_size, intermediate_size), jnp.float32) * 0.05

    # One-time weight prep (model-load time): bf16, pre-transposed, gate||up fused.
    w_gu, w_dn, tile_k = prepare_mistral_mlp_weights(
        w_gate, w_up, w_down, tile_k=256, dtype=jnp.bfloat16)

    x_bf16 = x.astype(jnp.bfloat16)
    y = mistral_mlp_pallas(x_bf16, w_gu, w_dn, tile_k=tile_k, tile_m=128)
    y = jax.block_until_ready(y)

    # Reference: f32 math on the same bf16-rounded inputs/weights.
    y_ref = mistral_mlp_ref(
        x_bf16.astype(jnp.float32),
        w_gate.astype(jnp.bfloat16).astype(jnp.float32),
        w_up.astype(jnp.bfloat16).astype(jnp.float32),
        w_down.astype(jnp.bfloat16).astype(jnp.float32),
    )

    assert y.shape == (batch, seq, hidden_size)
    assert jnp.allclose(y.astype(jnp.float32), y_ref, atol=3e-2, rtol=3e-2), \
        "mismatch vs reference"

    print("KERNEL_OK")
</pallas_src>

<mosaic_0001>
module attributes {stable_mosaic.version = 11 : i64} {
  func.func @_mlp_kernel(%arg0: i32, %arg1: i32, %arg2: memref<128x128xbf16, #tpu.memory_space<vmem>>, %arg3: memref<128x512xbf16, #tpu.memory_space<vmem>>, %arg4: memref<256x128xbf16, #tpu.memory_space<vmem>>, %arg5: memref<128x128xbf16, #tpu.memory_space<vmem>>, %arg6: memref<128x128xf32, #tpu.memory_space<vmem>>) attributes {dimension_semantics = [#tpu.dimension_semantics<parallel>, #tpu.dimension_semantics<arbitrary>], iteration_bounds = array<i64: 2, 2>, scalar_prefetch = 0 : i64, scratch_operands = 1 : i64, tpu.core_type = #tpu.core_type<tc>, window_params = [{transform_indices = @transform_0, window_bounds = array<i64: 128, 128>}, {transform_indices = @transform_1, window_bounds = array<i64: 128, 512>}, {transform_indices = @transform_2, window_bounds = array<i64: 256, 128>}, {transform_indices = @transform_3, window_bounds = array<i64: 128, 128>}]} {
    %c0_i32 = arith.constant 0 : i32
    %0 = arith.cmpi eq, %arg1, %c0_i32 : i32
    %1 = arith.extui %0 : i1 to i32
    %c0_i32_0 = arith.constant 0 : i32
    %2 = arith.cmpi ne, %1, %c0_i32_0 : i32
    scf.if %2 {
      %cst_13 = arith.constant 0.000000e+00 : f32
      %24 = vector.broadcast %cst_13 : f32 to vector<128x128xf32>
      %c0_14 = arith.constant 0 : index
      %c0_15 = arith.constant 0 : index
      %25 = vector.load %arg6[%c0_14, %c0_15] : memref<128x128xf32, #tpu.memory_space<vmem>>, vector<128x128xf32>
      tpu.vector_store %arg6[%c0_14, %c0_15], %24 {strides = array<i32>} : memref<128x128xf32, #tpu.memory_space<vmem>>, vector<128x128xf32>,
    } else {
    }
    %c0 = arith.constant 0 : index
    %c0_1 = arith.constant 0 : index
    %3 = vector.load %arg2[%c0, %c0_1] : memref<128x128xbf16, #tpu.memory_space<vmem>>, vector<128x128xbf16>
    %c0_2 = arith.constant 0 : index
    %c0_3 = arith.constant 0 : index
    %4 = vector.load %arg3[%c0_2, %c0_3] : memref<128x512xbf16, #tpu.memory_space<vmem>>, vector<128x512xbf16>
    %cst = arith.constant dense<0.000000e+00> : vector<128x512xf32>
    %5 = tpu.matmul %3, %4, %cst {dimension_numbers = #tpu.dot_dimension_numbers<[1], [0], [0], [1], [0, 0, 1, 1], [], []>} : vector<128x128xbf16>, vector<128x512xbf16>, vector<128x512xf32> -> vector<128x512xf32>
    %6 = vector.extract_strided_slice %5 {offsets = [0, 0], sizes = [128, 256], strides = [1, 1]} : vector<128x512xf32> to vector<128x256xf32>
    %7 = vector.extract_strided_slice %5 {offsets = [0, 256], sizes = [128, 256], strides = [1, 1]} : vector<128x512xf32> to vector<128x256xf32>
    %8 = arith.negf %6 : vector<128x256xf32>
    %9 = math.exp %8 : vector<128x256xf32>
    %cst_4 = arith.constant 1.000000e+00 : f32
    %10 = vector.broadcast %cst_4 : f32 to vector<128x256xf32>
    %11 = arith.addf %10, %9 : vector<128x256xf32>
    %12 = arith.divf %10, %11 : vector<128x256xf32>
    %13 = arith.mulf %6, %12 : vector<128x256xf32>
    %14 = arith.mulf %13, %7 : vector<128x256xf32>
    %c0_5 = arith.constant 0 : index
    %c0_6 = arith.constant 0 : index
    %15 = vector.load %arg6[%c0_5, %c0_6] : memref<128x128xf32, #tpu.memory_space<vmem>>, vector<128x128xf32>
    %16 = arith.truncf %14 : vector<128x256xf32> to vector<128x256xbf16>
    %c0_7 = arith.constant 0 : index
    %c0_8 = arith.constant 0 : index
    %17 = vector.load %arg4[%c0_7, %c0_8] : memref<256x128xbf16, #tpu.memory_space<vmem>>, vector<256x128xbf16>
    %cst_9 = arith.constant dense<0.000000e+00> : vector<128x128xf32>
    %18 = tpu.matmul %16, %17, %cst_9 {dimension_numbers = #tpu.dot_dimension_numbers<[1], [0], [0], [1], [0, 0, 1, 1], [], []>} : vector<128x256xbf16>, vector<256x128xbf16>, vector<128x128xf32> -> vector<128x128xf32>
    %19 = arith.addf %15, %18 : vector<128x128xf32>
    %c0_10 = arith.constant 0 : index
    %c0_11 = arith.constant 0 : index
    %20 = vector.load %arg6[%c0_10, %c0_11] : memref<128x128xf32, #tpu.memory_space<vmem>>, vector<128x128xf32>
    tpu.vector_store %arg6[%c0_10, %c0_11], %19 {strides = array<i32>} : memref<128x128xf32, #tpu.memory_space<vmem>>, vector<128x128xf32>,
    %c1_i32 = arith.constant 1 : i32
    %21 = arith.cmpi eq, %arg1, %c1_i32 : i32
    %22 = arith.extui %21 : i1 to i32
    %c0_i32_12 = arith.constant 0 : i32
    %23 = arith.cmpi ne, %22, %c0_i32_12 : i32
    scf.if %23 {
      %c0_13 = arith.constant 0 : index
      %c0_14 = arith.constant 0 : index
      %24 = vector.load %arg6[%c0_13, %c0_14] : memref<128x128xf32, #tpu.memory_space<vmem>>, vector<128x128xf32>
      %25 = arith.truncf %24 : vector<128x128xf32> to vector<128x128xbf16>
      %c0_15 = arith.constant 0 : index
      %c0_16 = arith.constant 0 : index
      %26 = vector.load %arg5[%c0_15, %c0_16] : memref<128x128xbf16, #tpu.memory_space<vmem>>, vector<128x128xbf16>
      tpu.vector_store %arg5[%c0_15, %c0_16], %25 {strides = array<i32>} : memref<128x128xbf16, #tpu.memory_space<vmem>>, vector<128x128xbf16>,
    } else {
    }
    return
  }
  func.func @transform_0(%arg0: i32, %arg1: i32) -> (i32, i32) {
    %c0_i32 = arith.constant 0 : i32
    %c0_i32_0 = arith.constant 0 : i32
    return %arg0, %c0_i32 : i32, i32
  }
  func.func @transform_1(%arg0: i32, %arg1: i32) -> (i32, i32) {
    %c0_i32 = arith.constant 0 : i32
    %c0_i32_0 = arith.constant 0 : i32
    return %c0_i32, %arg1 : i32, i32
  }
  func.func @transform_2(%arg0: i32, %arg1: i32) -> (i32, i32) {
    %c0_i32 = arith.constant 0 : i32
    %c0_i32_0 = arith.constant 0 : i32
    return %arg1, %c0_i32 : i32, i32
  }
  func.func @transform_3(%arg0: i32, %arg1: i32) -> (i32, i32) {
    %c0_i32 = arith.constant 0 : i32
    %c0_i32_0 = arith.constant 0 : i32
    return %arg0, %c0_i32 : i32, i32
  }
}

</mosaic_0001>

<llo_original>
// kernel: tpu_custom_call.1
$region0: #{tpu_custom_call.1}
  #allocation0 [shape = 'u32[]', space=smem, size = 0x4, offset = 0x4, fixed_abs, tag = 'smem constant byte address 0x4 - core index']
  #allocation1 [shape = 'u32[144,128]{1,0:T(1,128)}', space=vmem, size = 0x12000, scoped, tag = 'internal scratch']
  #allocation2 [shape = 'f32[128,128]{1,0:T(8,128)}', space=vmem, size = 0x10000, scoped, tag = 'scratch operand']
  %s0 = inlined_call_operand.hbm [shape: bf16[256,128], index: 0, kind: input, shape index: {}]
  %s1 = inlined_call_operand.hbm [shape: bf16[128,1024], index: 1, kind: input, shape index: {}]
  %s2 = inlined_call_operand.hbm [shape: bf16[512,128], index: 2, kind: input, shape index: {}]
  %s3 = inlined_call_operand.hbm [shape: bf16[256,128], index: 3, kind: output, shape index: {}]
  %s4 = sld [smem:[#allocation0]]
  $region65: #{tpu_custom_call.1} parent=0
    _
  %s6 = ssub.s32 1, %s4
  %s7 = scalar_select 0, %s6, %s4
  $region1: #{tpu_custom_call.1} parent=0
    #allocation3 [shape = 'u8[65536]{0}', space=vmem, size = 0x10000, scoped, tag = 'input window, operand 0']
    #allocation4 [shape = 's32[2]{0}', space=sflag, size = 0x8, scoped, tag = 'scoped memory for tpu_custom_call.1']
    #allocation5 [shape = 's32[2]{0}', space=sflag, size = 0x8, scoped, tag = 'scoped memory for tpu_custom_call.1']
    #allocation6 [shape = 'u8[262144]{0}', space=vmem, size = 0x40000, scoped, tag = 'input window, operand 1']
    #allocation7 [shape = 's32[2]{0}', space=sflag, size = 0x8, scoped, tag = 'scoped memory for tpu_custom_call.1']
    #allocation8 [shape = 'u8[131072]{0}', space=vmem, size = 0x20000, scoped, tag = 'input window, operand 2']
    #allocation9 [shape = 'u8[65536]{0}', space=vmem, size = 0x10000, scoped, tag = 'output window, operand 0']
    %8 = vsyncpa [#allocation4], 0
    %s9 = scalar_lea.sflag [#allocation4], 1
    %10 = vsyncpa %s9, 0
    %11 = vsyncpa [#allocation7], 0
    %s12 = scalar_lea.sflag [#allocation7], 1
    %13 = vsyncpa %s12, 0
    %14 = vsyncpa [#allocation5], 0
    %s15 = scalar_lea.sflag [#allocation5], 1
    %16 = vsyncpa %s15, 0
    loop: start=0, step=1, limit=6
    $region2: #{tpu_custom_call.1} parent=1 // loop_pre_header
      _
    $region3: #{tpu_custom_call.1} parent=1 // loop_header
      %s18 = sphi 0, %s22
      %p19 = scmp.ge.s32.totalorder %s18, 6
      %s25 = sphi 0, %s37
      %s26 = sphi 0, %s33
      %s27 = sphi 0, %s25
      %s28 = sphi 0, %s26
      %s29 = sphi 0, %s27
      %s30 = sphi 0, %s28
      %s40 = sphi 0, %s42
      %s43 = sphi 0, %s40
      %s44 = sphi 0, %s43
      %s60 = sphi 0, %s44
      %s66 = sphi 0, %s68
      %s69 = sphi 0, %s66
      %s70 = sphi 0, %s69
      %s86 = sphi 0, %s70
      %s92 = sphi 0, %s94
      %s95 = sphi 0, %s92
      %s96 = sphi 0, %s95
      %s112 = sphi 0, %s96
      %s118 = sphi 0, %s120
      %s121 = sphi 0, %s118
      %s122 = sphi 0, %s121
      %s138 = sphi 0, %s122
    $region4: #{tpu_custom_call.1} parent=1 // loop_header_branch
      %21 = sbr.rel (%p19) target = $region8
    $region5: #{tpu_custom_call.1} parent=1 // loop_body
      %s23 = ssub.s32 %s18, 1
      %s24 = ssub.s32 %s18, 2
      %s31 = sadd.s32 1, %s26
      %p32 = scmp.ge.s32.totalorder %s31, 2
      %s33 = scalar_select %p32, 0, %s31
      %s34 = sadd.s32 1, %s25
      %s35 = scalar_select %p32, %s34, %s25
      %p36 = scmp.ge.s32.totalorder %s35, 2
      %s37 = scalar_select %p36, 0, %s35
      %s38 = ssub.s32 %s25, %s37
      %p39 = scmp.eq.s32.totalorder %s38, 0
      %s41 = sadd.s32 %s40, 1
      %s42 = scalar_select %p39, %s40, %s41
      %p45 = pneg %p39
      %p46 = scmp.eq.s32.totalorder %s18, 3
      %p47 = por %p45, %p46
      %p48 = scmp.ne.s32.totalorder %s40, %s43
      %p49 = scmp.eq.s32.totalorder %s18, 0
      %p50 = por %p48, %p49
      %p51 = scmp.ne.s32.totalorder %s40, %s43
      %p52 = scmp.eq.s32.totalorder %s23, 3
      %p53 = por %p51, %p52
      %p54 = scmp.ne.s32.totalorder %s43, %s44
      %p55 = scmp.eq.s32.totalorder %s23, 0
      %p56 = por %p54, %p55
      %p57 = scmp.ne.s32.totalorder %s43, %s44
      %p58 = scmp.eq.s32.totalorder %s24, 3
      %p59 = por %p57, %p58
      %p61 = scmp.ne.s32.totalorder %s44, %s60
      %p62 = scmp.eq.s32.totalorder %s24, 0
      %p63 = por %p61, %p62
      %s64 = ssub.s32 %s26, %s33
      %p65 = scmp.eq.s32.totalorder %s64, 0
      %s67 = sadd.s32 %s66, 1
      %s68 = scalar_select %p65, %s66, %s67
      %p71 = pneg %p65
      %p72 = scmp.eq.s32.totalorder %s18, 3
      %p73 = por %p71, %p72
      %p74 = scmp.ne.s32.totalorder %s66, %s69
      %p75 = scmp.eq.s32.totalorder %s18, 0
      %p76 = por %p74, %p75
      %p77 = scmp.ne.s32.totalorder %s66, %s69
      %p78 = scmp.eq.s32.totalorder %s23, 3
      %p79 = por %p77, %p78
      %p80 = scmp.ne.s32.totalorder %s69, %s70
      %p81 = scmp.eq.s32.totalorder %s23, 0
      %p82 = por %p80, %p81
      %p83 = scmp.ne.s32.totalorder %s69, %s70
      %p84 = scmp.eq.s32.totalorder %s24, 3
      %p85 = por %p83, %p84
      %p87 = scmp.ne.s32.totalorder %s70, %s86
      %p88 = scmp.eq.s32.totalorder %s24, 0
      %p89 = por %p87, %p88
      %s90 = ssub.s32 %s26, %s33
      %p91 = scmp.eq.s32.totalorder %s90, 0
      %s93 = sadd.s32 %s92, 1
      %s94 = scalar_select %p91, %s92, %s93
      %p97 = pneg %p91
      %p98 = scmp.eq.s32.totalorder %s18, 3
      %p99 = por %p97, %p98
      %p100 = scmp.ne.s32.totalorder %s92, %s95
      %p101 = scmp.eq.s32.totalorder %s18, 0
      %p102 = por %p100, %p101
      %p103 = scmp.ne.s32.totalorder %s92, %s95
      %p104 = scmp.eq.s32.totalorder %s23, 3
      %p105 = por %p103, %p104
      %p106 = scmp.ne.s32.totalorder %s95, %s96
      %p107 = scmp.eq.s32.totalorder %s23, 0
      %p108 = por %p106, %p107
      %p109 = scmp.ne.s32.totalorder %s95, %s96
      %p110 = scmp.eq.s32.totalorder %s24, 3
      %p111 = por %p109, %p110
      %p113 = scmp.ne.s32.totalorder %s96, %s112
      %p114 = scmp.eq.s32.totalorder %s24, 0
      %p115 = por %p113, %p114
      %s116 = ssub.s32 %s25, %s37
      %p117 = scmp.eq.s32.totalorder %s116, 0
      %s119 = sadd.s32 %s118, 1
      %s120 = scalar_select %p117, %s118, %s119
      %p123 = pneg %p117
      %p124 = scmp.eq.s32.totalorder %s18, 3
      %p125 = por %p123, %p124
      %p126 = scmp.ne.s32.totalorder %s118, %s121
      %p127 = scmp.eq.s32.totalorder %s18, 0
      %p128 = por %p126, %p127
      %p129 = scmp.ne.s32.totalorder %s118, %s121
      %p130 = scmp.eq.s32.totalorder %s23, 3
      %p131 = por %p129, %p130
      %p132 = scmp.ne.s32.totalorder %s121, %s122
      %p133 = scmp.eq.s32.totalorder %s23, 0
      %p134 = por %p132, %p133
      %p135 = scmp.ne.s32.totalorder %s121, %s122
      %p136 = scmp.eq.s32.totalorder %s24, 3
      %p137 = por %p135, %p136
      %p139 = scmp.ne.s32.totalorder %s122, %s138
      %p140 = scmp.eq.s32.totalorder %s24, 0
      %p141 = por %p139, %p140
      %p142 = scmp.le.s32.totalorder 1, %s18
      %p143 = scmp.lt.s32.totalorder %s18, 5
      %p144 = pnand %p142, %p143
      %p145 = pneg %p144
      // Predicated region
      $region9: #{tpu_custom_call.1} parent=5 // pred_check
        _
      $region10: #{tpu_custom_call.1} parent=5 // pred_check_branch
        %147 = sbr.rel (%p144) target = $region12
      $region11: #{tpu_custom_call.1} parent=5 // pred_region
        %s148 = ssub.s32 %s18, 1
      $region12: #{tpu_custom_call.1} parent=5 // pred_fallthru
        _
      %p149 = scmp.lt.s32.totalorder %s18, 4
      // Predicated region
      $region13: #{tpu_custom_call.1} parent=5 // pred_check
        %p150 = pneg %p149
      $region14: #{tpu_custom_call.1} parent=5 // pred_check_branch
        %152 = sbr.rel (%p150) target = $region16
      $region15: #{tpu_custom_call.1} parent=5 // pred_region
        // Predicated region
        $region17: #{tpu_custom_call.1} parent=15 // pred_check
          %p153 = pneg %p50
        $region18: #{tpu_custom_call.1} parent=15 // pred_check_branch
          %155 = sbr.rel (%p153) target = $region20
        $region19: #{tpu_custom_call.1} parent=15 // pred_region
          %s156 = sand.u32 %s40, 1
          %s157 = scalar_lea.sflag [#allocation4], %s156
          %s158 = sand.u32 %s40, 1
          %s159 = smul.addr %s158, 64
          %s160 = scalar_lea.vmem [#allocation3], %s159
          %s161 = smul.u32 16, %s25
          %s163 = ssub.s32 1024, 1024
          %164 = vsyncadd %s157, %s163
          %s165 = smul.addr %s161, 64
          %s166 = scalar_lea.hbm %s0, %s165
          %s167 = sshll.u32 %s160, 4
          %s168 = int_to_ptr.vmem [resolvable:$true] %s167
          %173 = dma.hbm_to_vmem [thread:$0]  %s166, 1024, %s168, %s157, 64, 64, 4
        $region20: #{tpu_custom_call.1} parent=15 // pred_fallthru
          _
        // Predicated region
        $region21: #{tpu_custom_call.1} parent=15 // pred_check
          %p174 = pneg %p76
        $region22: #{tpu_custom_call.1} parent=15 // pred_check_branch
          %176 = sbr.rel (%p174) target = $region24
        $region23: #{tpu_custom_call.1} parent=15 // pred_region
          %s177 = sand.u32 %s18, 1
          %s178 = scalar_lea.sflag [#allocation7], %s177
          %s179 = sand.u32 %s66, 1
          %s180 = smul.addr %s179, 256
          %s181 = scalar_lea.vmem [#allocation6], %s180
          %s182 = smul.u32 4, %s26
          %s184 = ssub.s32 4096, 4096
          %185 = vsyncadd %s178, %s184
          %s186 = smul.addr %s182, 64
          %s187 = scalar_lea.hbm %s1, %s186
          %s188 = sshll.u32 %s181, 4
          %s189 = int_to_ptr.vmem [resolvable:$true] %s188
          %194 = dma.hbm_to_vmem [thread:$0]  %s187, 4096, %s189, %s178, 512, 256, 16
        $region24: #{tpu_custom_call.1} parent=15 // pred_fallthru
          _
        // Predicated region
        $region25: #{tpu_custom_call.1} parent=15 // pred_check
          %p195 = pneg %p102
        $region26: #{tpu_custom_call.1} parent=15 // pred_check_branch
          %197 = sbr.rel (%p195) target = $region28
        $region27: #{tpu_custom_call.1} parent=15 // pred_region
          %s198 = sand.u32 %s18, 1
          %s199 = scalar_lea.sflag [#allocation7], %s198
          %s200 = sand.u32 %s92, 1
          %s201 = smul.addr %s200, 128
          %s202 = scalar_lea.vmem [#allocation8], %s201
          %s203 = smul.u32 32, %s26
          %s205 = ssub.s32 2048, 2048
          %206 = vsyncadd %s199, %s205
          %s207 = smul.addr %s203, 64
          %s208 = scalar_lea.hbm %s2, %s207
          %s209 = sshll.u32 %s202, 4
          %s210 = int_to_ptr.vmem [resolvable:$true] %s209
          %215 = dma.hbm_to_vmem [thread:$0]  %s208, 2048, %s210, %s199, 64, 64, 4
        $region28: #{tpu_custom_call.1} parent=15 // pred_fallthru
          _
      $region16: #{tpu_custom_call.1} parent=5 // pred_fallthru
        _
      %p216 = scmp.le.s32.totalorder 1, %s18
      %p217 = scmp.lt.s32.totalorder %s18, 5
      %p218 = pnand %p216, %p217
      %p219 = pneg %p218
      // Predicated region
      $region29: #{tpu_custom_call.1} parent=5 // pred_check
        _
      $region30: #{tpu_custom_call.1} parent=5 // pred_check_branch
        %221 = sbr.rel (%p218) target = $region32
      $region31: #{tpu_custom_call.1} parent=5 // pred_region
        %s222 = ssub.s32 %s18, 1
        %s223 = sand.u32 %s43, 1
        %s224 = scalar_lea.sflag [#allocation4], %s223
        %s225 = sand.u32 %s43, 1
        %s226 = smul.addr %s225, 64
        %s227 = scalar_lea.vmem [#allocation3], %s226
        // Predicated region
        $region33: #{tpu_custom_call.1} parent=31 // pred_check
          %p228 = pneg %p56
        $region34: #{tpu_custom_call.1} parent=31 // pred_check_branch
          %230 = sbr.rel (%p228) target = $region36
        $region35: #{tpu_custom_call.1} parent=31 // pred_region
          %231 = dma.done %s224, 1024
        $region36: #{tpu_custom_call.1} parent=31 // pred_fallthru
          _
        %s232 = sand.u32 %s23, 1
        %s233 = scalar_lea.sflag [#allocation7], %s232
        %s234 = sand.u32 %s69, 1
        %s235 = smul.addr %s234, 256
        %s236 = scalar_lea.vmem [#allocation6], %s235
        // Predicated region
        $region37: #{tpu_custom_call.1} parent=31 // pred_check
          %p237 = pneg %p82
        $region38: #{tpu_custom_call.1} parent=31 // pred_check_branch
          %239 = sbr.rel (%p237) target = $region40
        $region39: #{tpu_custom_call.1} parent=31 // pred_region
          %240 = dma.done %s233, 4096
        $region40: #{tpu_custom_call.1} parent=31 // pred_fallthru
          _
        %s241 = sand.u32 %s23, 1
        %s242 = scalar_lea.sflag [#allocation7], %s241
        %s243 = sand.u32 %s95, 1
        %s244 = smul.addr %s243, 128
        %s245 = scalar_lea.vmem [#allocation8], %s244
        // Predicated region
        $region41: #{tpu_custom_call.1} parent=31 // pred_check
          %p246 = pneg %p108
        $region42: #{tpu_custom_call.1} parent=31 // pred_check_branch
          %248 = sbr.rel (%p246) target = $region44
        $region43: #{tpu_custom_call.1} parent=31 // pred_region
          %249 = dma.done %s242, 2048
        $region44: #{tpu_custom_call.1} parent=31 // pred_fallthru
          _
        %s250 = sand.u32 %s43, 1
        %s251 = scalar_lea.sflag [#allocation4], %s250
        %s252 = sand.u32 %s43, 1
        %s253 = smul.addr %s252, 64
        %s254 = scalar_lea.vmem [#allocation3], %s253
        %p255 = pneg %p56
        %p256 = pneg %p53
        %s257 = sand.u32 %s23, 1
        %s258 = scalar_lea.sflag [#allocation7], %s257
        %s259 = sand.u32 %s69, 1
        %s260 = smul.addr %s259, 256
        %s261 = scalar_lea.vmem [#allocation6], %s260
        %p262 = pneg %p82
        %p263 = pneg %p79
        %s264 = sand.u32 %s23, 1
        %s265 = scalar_lea.sflag [#allocation7], %s264
        %s266 = sand.u32 %s95, 1
        %s267 = smul.addr %s266, 128
        %s268 = scalar_lea.vmem [#allocation8], %s267
        %p269 = pneg %p108
        %p270 = pneg %p105
        %p271 = pneg %p134
        %p272 = pneg %p131
        %s273 = sand.u32 %s121, 1
        %s274 = scalar_lea.sflag [#allocation5], %s273
        %s275 = sand.u32 %s121, 1
        %s276 = smul.addr %s275, 64
        %s277 = scalar_lea.vmem [#allocation9], %s276
        %s278 = smul.u32 16, %s27
        %s279 = smul.u32 4, %s28
        %s280 = smul.u32 32, %s28
        %s281 = smul.u32 16, %s27
        %p283 = scmp.eq.s32.totalorder %s28, 0
        // Predicated region
        $region45: #{tpu_custom_call.1} parent=31 // pred_check
          %p284 = pneg %p283
        $region46: #{tpu_custom_call.1} parent=31 // pred_check_branch
          %286 = sbr.rel (%p284) target = $region48
        $region47: #{tpu_custom_call.1} parent=31 // pred_region
          %287 = vst [vmem:[#allocation2] sm:$0xff] 0.0
          %288 = vst [vmem:[#allocation2 + $0x8] sm:$0xff] 0.0
          %289 = vst [vmem:[#allocation2 + $0x10] sm:$0xff] 0.0
          %290 = vst [vmem:[#allocation2 + $0x18] sm:$0xff] 0.0
          %291 = vst [vmem:[#allocation2 + $0x20] sm:$0xff] 0.0
          %292 = vst [vmem:[#allocation2 + $0x28] sm:$0xff] 0.0
          %293 = vst [vmem:[#allocation2 + $0x30] sm:$0xff] 0.0
          %294 = vst [vmem:[#allocation2 + $0x38] sm:$0xff] 0.0
          %295 = vst [vmem:[#allocation2 + $0x40] sm:$0xff] 0.0
          %296 = vst [vmem:[#allocation2 + $0x48] sm:$0xff] 0.0
          %297 = vst [vmem:[#allocation2 + $0x50] sm:$0xff] 0.0
          %298 = vst [vmem:[#allocation2 + $0x58] sm:$0xff] 0.0
          %299 = vst [vmem:[#allocation2 + $0x60] sm:$0xff] 0.0
          %300 = vst [vmem:[#allocation2 + $0x68] sm:$0xff] 0.0
          %301 = vst [vmem:[#allocation2 + $0x70] sm:$0xff] 0.0
          %302 = vst [vmem:[#allocation2 + $0x78] sm:$0xff] 0.0
        $region48: #{tpu_custom_call.1} parent=31 // pred_fallthru
          _
        %v303 = vld [vmem:[%s227] sm:$0xf]
        %v304 = vld [vmem:[%s227 + $0x4] sm:$0xf]
        %v305 = vld [vmem:[%s227 + $0x8] sm:$0xf]
        %v306 = vld [vmem:[%s227 + $0xc] sm:$0xf]
        %v307 = vld [vmem:[%s227 + $0x10] sm:$0xf]
        %v308 = vld [vmem:[%s227 + $0x14] sm:$0xf]
        %v309 = vld [vmem:[%s227 + $0x18] sm:$0xf]
        %v310 = vld [vmem:[%s227 + $0x1c] sm:$0xf]
        %v311 = vld [vmem:[%s227 + $0x20] sm:$0xf]
        %v312 = vld [vmem:[%s227 + $0x24] sm:$0xf]
        %v313 = vld [vmem:[%s227 + $0x28] sm:$0xf]
        %v314 = vld [vmem:[%s227 + $0x2c] sm:$0xf]
        %v315 = vld [vmem:[%s227 + $0x30] sm:$0xf]
        %v316 = vld [vmem:[%s227 + $0x34] sm:$0xf]
        %v317 = vld [vmem:[%s227 + $0x38] sm:$0xf]
        %v318 = vld [vmem:[%s227 + $0x3c] sm:$0xf]
        %v319 = vld [vmem:[%s236] sm:$0xff]
        %v320 = vld [vmem:[%s236 + $0x8] sm:$0xff]
        %v321 = vld [vmem:[%s236 + $0x10] sm:$0xff]
        %v322 = vld [vmem:[%s236 + $0x18] sm:$0xff]
        %v323 = vld [vmem:[%s236 + $0x20] sm:$0xff]
        %v324 = vld [vmem:[%s236 + $0x28] sm:$0xff]
        %v325 = vld [vmem:[%s236 + $0x30] sm:$0xff]
        %v326 = vld [vmem:[%s236 + $0x38] sm:$0xff]
        %v327 = vld [vmem:[%s236 + $0x40] sm:$0xff]
        %v328 = vld [vmem:[%s236 + $0x48] sm:$0xff]
        %v329 = vld [vmem:[%s236 + $0x50] sm:$0xff]
        %v330 = vld [vmem:[%s236 + $0x58] sm:$0xff]
        %v331 = vld [vmem:[%s236 + $0x60] sm:$0xff]
        %v332 = vld [vmem:[%s236 + $0x68] sm:$0xff]
        %v333 = vld [vmem:[%s236 + $0x70] sm:$0xff]
        %v334 = vld [vmem:[%s236 + $0x78] sm:$0xff]
        %v335 = vld [vmem:[%s236 + $0x80] sm:$0xff]
        %v336 = vld [vmem:[%s236 + $0x88] sm:$0xff]
        %v337 = vld [vmem:[%s236 + $0x90] sm:$0xff]
        %v338 = vld [vmem:[%s236 + $0x98] sm:$0xff]
        %v339 = vld [vmem:[%s236 + $0xa0] sm:$0xff]
        %v340 = vld [vmem:[%s236 + $0xa8] sm:$0xff]
        %v341 = vld [vmem:[%s236 + $0xb0] sm:$0xff]
        %v342 = vld [vmem:[%s236 + $0xb8] sm:$0xff]
        %v343 = vld [vmem:[%s236 + $0xc0] sm:$0xff]
        %v344 = vld [vmem:[%s236 + $0xc8] sm:$0xff]
        %v345 = vld [vmem:[%s236 + $0xd0] sm:$0xff]
        %v346 = vld [vmem:[%s236 + $0xd8] sm:$0xff]
        %v347 = vld [vmem:[%s236 + $0xe0] sm:$0xff]
        %v348 = vld [vmem:[%s236 + $0xe8] sm:$0xff]
        %v349 = vld [vmem:[%s236 + $0xf0] sm:$0xff]
        %v350 = vld [vmem:[%s236 + $0xf8] sm:$0xff]
        %v367 = vunpack.c.l.b16 %v303
        %v368 = vunpack.c.l.b16 %v304
        %v369 = vunpack.c.l.b16 %v305
        %v370 = vunpack.c.l.b16 %v306
        %v371 = vunpack.c.l.b16 %v307
        %v372 = vunpack.c.l.b16 %v308
        %v373 = vunpack.c.l.b16 %v309
        %v374 = vunpack.c.l.b16 %v310
        %v375 = vunpack.c.l.b16 %v311
        %v376 = vunpack.c.l.b16 %v312
        %v377 = vunpack.c.l.b16 %v313
        %v378 = vunpack.c.l.b16 %v314
        %v379 = vunpack.c.l.b16 %v315
        %v380 = vunpack.c.l.b16 %v316
        %v381 = vunpack.c.l.b16 %v317
        %v382 = vunpack.c.l.b16 %v318
        %v383 = vpack.c.b16 %v368, %v367
        %v384 = vpack.c.b16 %v370, %v369
        %v385 = vpack.c.b16 %v372, %v371
        %v386 = vpack.c.b16 %v374, %v373
        %v387 = vpack.c.b16 %v376, %v375
        %v388 = vpack.c.b16 %v378, %v377
        %v389 = vpack.c.b16 %v380, %v379
        %v390 = vpack.c.b16 %v382, %v381
        %v431 = vunpack.c.l.b16 %v319
        %v432 = vunpack.c.h.b16 %v319
        %v433 = vunpack.c.l.b16 %v320
        %v434 = vunpack.c.h.b16 %v320
        %v435 = vunpack.c.l.b16 %v321
        %v436 = vunpack.c.h.b16 %v321
        %v437 = vunpack.c.l.b16 %v322
        %v438 = vunpack.c.h.b16 %v322
        %v439 = vunpack.c.l.b16 %v323
        %v440 = vunpack.c.h.b16 %v323
        %v441 = vunpack.c.l.b16 %v324
        %v442 = vunpack.c.h.b16 %v324
        %v443 = vunpack.c.l.b16 %v325
        %v444 = vunpack.c.h.b16 %v325
        %v445 = vunpack.c.l.b16 %v326
        %v446 = vunpack.c.h.b16 %v326
        %v447 = vunpack.c.l.b16 %v327
        %v448 = vunpack.c.h.b16 %v327
        %v449 = vunpack.c.l.b16 %v328
        %v450 = vunpack.c.h.b16 %v328
        %v451 = vunpack.c.l.b16 %v329
        %v452 = vunpack.c.h.b16 %v329
        %v453 = vunpack.c.l.b16 %v330
        %v454 = vunpack.c.h.b16 %v330
        %v455 = vunpack.c.l.b16 %v331
        %v456 = vunpack.c.h.b16 %v331
        %v457 = vunpack.c.l.b16 %v332
        %v458 = vunpack.c.h.b16 %v332
        %v459 = vunpack.c.l.b16 %v333
        %v460 = vunpack.c.h.b16 %v333
        %v461 = vunpack.c.l.b16 %v334
        %v462 = vunpack.c.h.b16 %v334
        %v463 = vunpack.c.l.b16 %v335
        %v464 = vunpack.c.h.b16 %v335
        %v465 = vunpack.c.l.b16 %v336
        %v466 = vunpack.c.h.b16 %v336
        %v467 = vunpack.c.l.b16 %v337
        %v468 = vunpack.c.h.b16 %v337
        %v469 = vunpack.c.l.b16 %v338
        %v470 = vunpack.c.h.b16 %v338
        %v471 = vunpack.c.l.b16 %v339
        %v472 = vunpack.c.h.b16 %v339
        %v473 = vunpack.c.l.b16 %v340
        %v474 = vunpack.c.h.b16 %v340
        %v475 = vunpack.c.l.b16 %v341
        %v476 = vunpack.c.h.b16 %v341
        %v477 = vunpack.c.l.b16 %v342
        %v478 = vunpack.c.h.b16 %v342
        %v479 = vunpack.c.l.b16 %v343
        %v480 = vunpack.c.h.b16 %v343
        %v481 = vunpack.c.l.b16 %v344
        %v482 = vunpack.c.h.b16 %v344
        %v483 = vunpack.c.l.b16 %v345
        %v484 = vunpack.c.h.b16 %v345
        %v485 = vunpack.c.l.b16 %v346
        %v486 = vunpack.c.h.b16 %v346
        %v487 = vunpack.c.l.b16 %v347
        %v488 = vunpack.c.h.b16 %v347
        %v489 = vunpack.c.l.b16 %v348
        %v490 = vunpack.c.h.b16 %v348
        %v491 = vunpack.c.l.b16 %v349
        %v492 = vunpack.c.h.b16 %v349
        %v493 = vunpack.c.l.b16 %v350
        %v494 = vunpack.c.h.b16 %v350
        %v495 = vpack.c.b16 %v435, %v431
        %v496 = vpack.c.b16 %v436, %v432
        %v497 = vpack.c.b16 %v437, %v433
        %v498 = vpack.c.b16 %v438, %v434
        %v499 = vpack.c.b16 %v443, %v439
        %v500 = vpack.c.b16 %v444, %v440
        %v501 = vpack.c.b16 %v445, %v441
        %v502 = vpack.c.b16 %v446, %v442
        %v503 = vpack.c.b16 %v451, %v447
        %v504 = vpack.c.b16 %v452, %v448
        %v505 = vpack.c.b16 %v453, %v449
        %v506 = vpack.c.b16 %v454, %v450
        %v507 = vpack.c.b16 %v459, %v455
        %v508 = vpack.c.b16 %v460, %v456
        %v509 = vpack.c.b16 %v461, %v457
        %v510 = vpack.c.b16 %v462, %v458
        %v511 = vpack.c.b16 %v467, %v463
        %v512 = vpack.c.b16 %v468, %v464
        %v513 = vpack.c.b16 %v469, %v465
        %v514 = vpack.c.b16 %v470, %v466
        %v515 = vpack.c.b16 %v475, %v471
        %v516 = vpack.c.b16 %v476, %v472
        %v517 = vpack.c.b16 %v477, %v473
        %v518 = vpack.c.b16 %v478, %v474
        %v519 = vpack.c.b16 %v483, %v479
        %v520 = vpack.c.b16 %v484, %v480
        %v521 = vpack.c.b16 %v485, %v481
        %v522 = vpack.c.b16 %v486, %v482
        %v523 = vpack.c.b16 %v491, %v487
        %v524 = vpack.c.b16 %v492, %v488
        %v525 = vpack.c.b16 %v493, %v489
        %v526 = vpack.c.b16 %v494, %v490
        %559 = vmatprep.subr.bf16.mxu0 %v496
        %560 = vmatpush1.bf16.msra.mxu0 %v495
        %561 = vmatprep.subr.bf16.mxu0 %v500
        %562 = vmatpush1.bf16.msra.mxu0 %v499
        %563 = vmatprep.subr.bf16.mxu0 %v504
        %564 = vmatpush1.bf16.msra.mxu0 %v503
        %565 = vmatprep.subr.bf16.mxu0 %v508
        %566 = vmatpush1.bf16.msra.mxu0 %v507
        %567 = vmatprep.subr.bf16.mxu0 %v512
        %568 = vmatpush1.bf16.msra.mxu0 %v511
        %569 = vmatprep.subr.bf16.mxu0 %v516
        %570 = vmatpush1.bf16.msra.mxu0 %v515
        %571 = vmatprep.subr.bf16.mxu0 %v520
        %572 = vmatpush1.bf16.msra.mxu0 %v519
        %573 = vmatprep.subr.bf16.mxu0 %v524
        %574 = vmatpush1.bf16.msra.mxu0 %v523
        %575 = vmatprep.subr.bf16.mxu0 0
        %576 = vmatpush1.bf16.msra.mxu0 0
        %577 = vmatprep.subr.bf16.mxu0 0
        %578 = vmatpush1.bf16.msra.mxu0 0
        %579 = vmatprep.subr.bf16.mxu0 0
        %580 = vmatpush1.bf16.msra.mxu0 0
        %581 = vmatprep.subr.bf16.mxu0 0
        %582 = vmatpush1.bf16.msra.mxu0 0
        %583 = vmatprep.subr.bf16.mxu0 0
        %584 = vmatpush1.bf16.msra.mxu0 0
        %585 = vmatprep.subr.bf16.mxu0 0
        %586 = vmatpush1.bf16.msra.mxu0 0
        %587 = vmatprep.subr.bf16.mxu0 0
        %588 = vmatpush1.bf16.msra.mxu0 0
        %589 = vmatprep.subr.bf16.mxu0 0
        %590 = vmatpush1.bf16.msra.mxu0 0
        %591 = vmatprep.mubr.bf16.mxu0 0
        %592 = vmatmul.mubr.bf16.gmra.mrb[0].mxu0 %v383
        %v593 = vpop.f32.mrb[0].mxu0
        %v594 = vadd.f32 0.0, %v593
        %v595 = vpop.f32.mrb[0].mxu0
        %v596 = vadd.f32 0.0, %v595
        %v597 = vpop.f32.mrb[0].mxu0
        %v598 = vadd.f32 0.0, %v597
        %v599 = vpop.f32.mrb[0].mxu0
        %v600 = vadd.f32 0.0, %v599
        %601 = vmatprep.mubr.bf16.mxu0 0
        %602 = vmatmul.mubr.bf16.gmra.mrb[0].mxu0 %v384
        %v603 = vpop.f32.mrb[0].mxu0
        %v604 = vadd.f32 0.0, %v603
        %v605 = vpop.f32.mrb[0].mxu0
        %v606 = vadd.f32 0.0, %v605
        %v607 = vpop.f32.mrb[0].mxu0
        %v608 = vadd.f32 0.0, %v607
        %v609 = vpop.f32.mrb[0].mxu0
        %v610 = vadd.f32 0.0, %v609
        %611 = vmatprep.mubr.bf16.mxu0 0
        %612 = vmatmul.mubr.bf16.gmra.mrb[0].mxu0 %v385
        %v613 = vpop.f32.mrb[0].mxu0
        %v614 = vadd.f32 0.0, %v613
        %v615 = vpop.f32.mrb[0].mxu0
        %v616 = vadd.f32 0.0, %v615
        %v617 = vpop.f32.mrb[0].mxu0
        %v618 = vadd.f32 0.0, %v617
        %v619 = vpop.f32.mrb[0].mxu0
        %v620 = vadd.f32 0.0, %v619
        %621 = vmatprep.mubr.bf16.mxu0 0
        %622 = vmatmul.mubr.bf16.gmra.mrb[0].mxu0 %v386
        %v623 = vpop.f32.mrb[0].mxu0
        %v624 = vadd.f32 0.0, %v623
        %v625 = vpop.f32.mrb[0].mxu0
        %v626 = vadd.f32 0.0, %v625
        %v627 = vpop.f32.mrb[0].mxu0
        %v628 = vadd.f32 0.0, %v627
        %v629 = vpop.f32.mrb[0].mxu0
        %v630 = vadd.f32 0.0, %v629
        %631 = vmatprep.mubr.bf16.mxu0 0
        %632 = vmatmul.mubr.bf16.gmra.mrb[0].mxu0 %v387
        %v633 = vpop.f32.mrb[0].mxu0
        %v634 = vadd.f32 0.0, %v633
        %v635 = vpop.f32.mrb[0].mxu0
        %v636 = vadd.f32 0.0, %v635
        %v637 = vpop.f32.mrb[0].mxu0
        %v638 = vadd.f32 0.0, %v637
        %v639 = vpop.f32.mrb[0].mxu0
        %v640 = vadd.f32 0.0, %v639
        %641 = vmatprep.mubr.bf16.mxu0 0
        %642 = vmatmul.mubr.bf16.gmra.mrb[0].mxu0 %v388
        %v643 = vpop.f32.mrb[0].mxu0
        %v644 = vadd.f32 0.0, %v643
        %v645 = vpop.f32.mrb[0].mxu0
        %v646 = vadd.f32 0.0, %v645
        %v647 = vpop.f32.mrb[0].mxu0
        %v648 = vadd.f32 0.0, %v647
        %v649 = vpop.f32.mrb[0].mxu0
        %v650 = vadd.f32 0.0, %v649
        %651 = vmatprep.mubr.bf16.mxu0 0
        %652 = vmatmul.mubr.bf16.gmra.mrb[0].mxu0 %v389
        %v653 = vpop.f32.mrb[0].mxu0
        %v654 = vadd.f32 0.0, %v653
        %v655 = vpop.f32.mrb[0].mxu0
        %v656 = vadd.f32 0.0, %v655
        %v657 = vpop.f32.mrb[0].mxu0
        %v658 = vadd.f32 0.0, %v657
        %v659 = vpop.f32.mrb[0].mxu0
        %v660 = vadd.f32 0.0, %v659
        %661 = vmatprep.mubr.bf16.mxu0 0
        %662 = vmatmul.mubr.bf16.gmra.mrb[0].mxu0 %v390
        %v663 = vpop.f32.mrb[0].mxu0
        %v664 = vadd.f32 0.0, %v663
        %v665 = vpop.f32.mrb[0].mxu0
        %v666 = vadd.f32 0.0, %v665
        %v667 = vpop.f32.mrb[0].mxu0
        %v668 = vadd.f32 0.0, %v667
        %v669 = vpop.f32.mrb[0].mxu0
        %v670 = vadd.f32 0.0, %v669
        %671 = vdwg.mxu0
        %672 = vmatprep.subr.bf16.mxu0 %v498
        %673 = vmatpush1.bf16.msra.mxu0 %v497
        %674 = vmatprep.subr.bf16.mxu0 %v502
        %675 = vmatpush1.bf16.msra.mxu0 %v501
        %676 = vmatprep.subr.bf16.mxu0 %v506
        %677 = vmatpush1.bf16.msra.mxu0 %v505
        %678 = vmatprep.subr.bf16.mxu0 %v510
        %679 = vmatpush1.bf16.msra.mxu0 %v509
        %680 = vmatprep.subr.bf16.mxu0 %v514
        %681 = vmatpush1.bf16.msra.mxu0 %v513
        %682 = vmatprep.subr.bf16.mxu0 %v518
        %683 = vmatpush1.bf16.msra.mxu0 %v517
        %684 = vmatprep.subr.bf16.mxu0 %v522
        %685 = vmatpush1.bf16.msra.mxu0 %v521
        %686 = vmatprep.subr.bf16.mxu0 %v526
        %687 = vmatpush1.bf16.msra.mxu0 %v525
        %688 = vmatprep.subr.bf16.mxu0 0
        %689 = vmatpush1.bf16.msra.mxu0 0
        %690 = vmatprep.subr.bf16.mxu0 0
        %691 = vmatpush1.bf16.msra.mxu0 0
        %692 = vmatprep.subr.bf16.mxu0 0
        %693 = vmatpush1.bf16.msra.mxu0 0
        %694 = vmatprep.subr.bf16.mxu0 0
        %695 = vmatpush1.bf16.msra.mxu0 0
        %696 = vmatprep.subr.bf16.mxu0 0
        %697 = vmatpush1.bf16.msra.mxu0 0
        %698 = vmatprep.subr.bf16.mxu0 0
        %699 = vmatpush1.bf16.msra.mxu0 0
        %700 = vmatprep.subr.bf16.mxu0 0
        %701 = vmatpush1.bf16.msra.mxu0 0
        %702 = vmatprep.subr.bf16.mxu0 0
        %703 = vmatpush1.bf16.msra.mxu0 0
        %704 = vmatprep.mubr.bf16.mxu0 0
        %705 = vmatmul.mubr.bf16.gmra.mrb[0].mxu0 %v383
        %v706 = vpop.f32.mrb[0].mxu0
        %v707 = vadd.f32 0.0, %v706
        %v708 = vpop.f32.mrb[0].mxu0
        %v709 = vadd.f32 0.0, %v708
        %v710 = vpop.f32.mrb[0].mxu0
        %v711 = vadd.f32 0.0, %v710
        %v712 = vpop.f32.mrb[0].mxu0
        %v713 = vadd.f32 0.0, %v712
        %714 = vmatprep.mubr.bf16.mxu0 0
        %715 = vmatmul.mubr.bf16.gmra.mrb[0].mxu0 %v384
        %v716 = vpop.f32.mrb[0].mxu0
        %v717 = vadd.f32 0.0, %v716
        %v718 = vpop.f32.mrb[0].mxu0
        %v719 = vadd.f32 0.0, %v718
        %v720 = vpop.f32.mrb[0].mxu0
        %v721 = vadd.f32 0.0, %v720
        %v722 = vpop.f32.mrb[0].mxu0
        %v723 = vadd.f32 0.0, %v722
        %724 = vmatprep.mubr.bf16.mxu0 0
        %725 = vmatmul.mubr.bf16.gmra.mrb[0].mxu0 %v385
        %v726 = vpop.f32.mrb[0].mxu0
        %v727 = vadd.f32 0.0, %v726
        %v728 = vpop.f32.mrb[0].mxu0
        %v729 = vadd.f32 0.0, %v728
        %v730 = vpop.f32.mrb[0].mxu0
        %v731 = vadd.f32 0.0, %v730
        %v732 = vpop.f32.mrb[0].mxu0
        %v733 = vadd.f32 0.0, %v732
        %734 = vmatprep.mubr.bf16.mxu0 0
        %735 = vmatmul.mubr.bf16.gmra.mrb[0].mxu0 %v386
        %v736 = vpop.f32.mrb[0].mxu0
        %v737 = vadd.f32 0.0, %v736
        %v738 = vpop.f32.mrb[0].mxu0
        %v739 = vadd.f32 0.0, %v738
        %v740 = vpop.f32.mrb[0].mxu0
        %v741 = vadd.f32 0.0, %v740
        %v742 = vpop.f32.mrb[0].mxu0
        %v743 = vadd.f32 0.0, %v742
        %744 = vmatprep.mubr.bf16.mxu0 0
        %745 = vmatmul.mubr.bf16.gmra.mrb[0].mxu0 %v387
        %v746 = vpop.f32.mrb[0].mxu0
        %v747 = vadd.f32 0.0, %v746
        %v748 = vpop.f32.mrb[0].mxu0
        %v749 = vadd.f32 0.0, %v748
        %v750 = vpop.f32.mrb[0].mxu0
        %v751 = vadd.f32 0.0, %v750
        %v752 = vpop.f32.mrb[0].mxu0
        %v753 = vadd.f32 0.0, %v752
        %754 = vmatprep.mubr.bf16.mxu0 0
        %755 = vmatmul.mubr.bf16.gmra.mrb[0].mxu0 %v388
        %v756 = vpop.f32.mrb[0].mxu0
        %v757 = vadd.f32 0.0, %v756
        %v758 = vpop.f32.mrb[0].mxu0
        %v759 = vadd.f32 0.0, %v758
        %v760 = vpop.f32.mrb[0].mxu0
        %v761 = vadd.f32 0.0, %v760
        %v762 = vpop.f32.mrb[0].mxu0
        %v763 = vadd.f32 0.0, %v762
        %764 = vmatprep.mubr.bf16.mxu0 0
        %765 = vmatmul.mubr.bf16.gmra.mrb[0].mxu0 %v389
        %v766 = vpop.f32.mrb[0].mxu0
        %v767 = vadd.f32 0.0, %v766
        %v768 = vpop.f32.mrb[0].mxu0
        %v769 = vadd.f32 0.0, %v768
        %v770 = vpop.f32.mrb[0].mxu0
        %v771 = vadd.f32 0.0, %v770
        %v772 = vpop.f32.mrb[0].mxu0
        %v773 = vadd.f32 0.0, %v772
        %774 = vmatprep.mubr.bf16.mxu0 0
        %775 = vmatmul.mubr.bf16.gmra.mrb[0].mxu0 %v390
        %v776 = vpop.f32.mrb[0].mxu0
        %v777 = vadd.f32 0.0, %v776
        %v778 = vpop.f32.mrb[0].mxu0
        %v779 = vadd.f32 0.0, %v778
        %v780 = vpop.f32.mrb[0].mxu0
        %v781 = vadd.f32 0.0, %v780
        %v782 = vpop.f32.mrb[0].mxu0
        %v783 = vadd.f32 0.0, %v782
        %784 = vdwg.mxu0
        %v785 = vxor.u32 %v594, 2147483648
        %v786 = vxor.u32 %v596, 2147483648
        %v787 = vxor.u32 %v598, 2147483648
        %v788 = vxor.u32 %v600, 2147483648
        %v789 = vxor.u32 %v604, 2147483648
        %v790 = vxor.u32 %v606, 2147483648
        %v791 = vxor.u32 %v608, 2147483648
        %v792 = vxor.u32 %v610, 2147483648
        %v793 = vxor.u32 %v614, 2147483648
        %v794 = vxor.u32 %v616, 2147483648
        %v795 = vxor.u32 %v618, 2147483648
        %v796 = vxor.u32 %v620, 2147483648
        %v797 = vxor.u32 %v624, 2147483648
        %v798 = vxor.u32 %v626, 2147483648
        %v799 = vxor.u32 %v628, 2147483648
        %v800 = vxor.u32 %v630, 2147483648
        %v801 = vxor.u32 %v634, 2147483648
        %v802 = vxor.u32 %v636, 2147483648
        %v803 = vxor.u32 %v638, 2147483648
        %v804 = vxor.u32 %v640, 2147483648
        %v805 = vxor.u32 %v644, 2147483648
        %v806 = vxor.u32 %v646, 2147483648
        %v807 = vxor.u32 %v648, 2147483648
        %v808 = vxor.u32 %v650, 2147483648
        %v809 = vxor.u32 %v654, 2147483648
        %v810 = vxor.u32 %v656, 2147483648
        %v811 = vxor.u32 %v658, 2147483648
        %v812 = vxor.u32 %v660, 2147483648
        %v813 = vxor.u32 %v664, 2147483648
        %v814 = vxor.u32 %v666, 2147483648
        %v815 = vxor.u32 %v668, 2147483648
        %v816 = vxor.u32 %v670, 2147483648
        %v817 = vmul.f32 %v785, 1.442695
        %v818 = vpow.pop %v817
        %v819 = vmul.f32 %v786, 1.442695
        %v820 = vpow.pop %v819
        %v821 = vmul.f32 %v787, 1.442695
        %v822 = vpow.pop %v821
        %v823 = vmul.f32 %v788, 1.442695
        %v824 = vpow.pop %v823
        %v825 = vmul.f32 %v789, 1.442695
        %v826 = vpow.pop %v825
        %v827 = vmul.f32 %v790, 1.442695
        %v828 = vpow.pop %v827
        %v829 = vmul.f32 %v791, 1.442695
        %v830 = vpow.pop %v829
        %v831 = vmul.f32 %v792, 1.442695
        %v832 = vpow.pop %v831
        %v833 = vmul.f32 %v793, 1.442695
        %v834 = vpow.pop %v833
        %v835 = vmul.f32 %v794, 1.442695
        %v836 = vpow.pop %v835
        %v837 = vmul.f32 %v795, 1.442695
        %v838 = vpow.pop %v837
        %v839 = vmul.f32 %v796, 1.442695
        %v840 = vpow.pop %v839
        %v841 = vmul.f32 %v797, 1.442695
        %v842 = vpow.pop %v841
        %v843 = vmul.f32 %v798, 1.442695
        %v844 = vpow.pop %v843
        %v845 = vmul.f32 %v799, 1.442695
        %v846 = vpow.pop %v845
        %v847 = vmul.f32 %v800, 1.442695
        %v848 = vpow.pop %v847
        %v849 = vmul.f32 %v801, 1.442695
        %v850 = vpow.pop %v849
        %v851 = vmul.f32 %v802, 1.442695
        %v852 = vpow.pop %v851
        %v853 = vmul.f32 %v803, 1.442695
        %v854 = vpow.pop %v853
        %v855 = vmul.f32 %v804, 1.442695
        %v856 = vpow.pop %v855
        %v857 = vmul.f32 %v805, 1.442695
        %v858 = vpow.pop %v857
        %v859 = vmul.f32 %v806, 1.442695
        %v860 = vpow.pop %v859
        %v861 = vmul.f32 %v807, 1.442695
        %v862 = vpow.pop %v861
        %v863 = vmul.f32 %v808, 1.442695
        %v864 = vpow.pop %v863
        %v865 = vmul.f32 %v809, 1.442695
        %v866 = vpow.pop %v865
        %v867 = vmul.f32 %v810, 1.442695
        %v868 = vpow.pop %v867
        %v869 = vmul.f32 %v811, 1.442695
        %v870 = vpow.pop %v869
        %v871 = vmul.f32 %v812, 1.442695
        %v872 = vpow.pop %v871
        %v873 = vmul.f32 %v813, 1.442695
        %v874 = vpow.pop %v873
        %v875 = vmul.f32 %v814, 1.442695
        %v876 = vpow.pop %v875
        %v877 = vmul.f32 %v815, 1.442695
        %v878 = vpow.pop %v877
        %v879 = vmul.f32 %v816, 1.442695
        %v880 = vpow.pop %v879
        %v881 = vadd.f32 %v818, 1.0
        %v882 = vadd.f32 %v820, 1.0
        %v883 = vadd.f32 %v822, 1.0
        %v884 = vadd.f32 %v824, 1.0
        %v885 = vadd.f32 %v826, 1.0
        %v886 = vadd.f32 %v828, 1.0
        %v887 = vadd.f32 %v830, 1.0
        %v888 = vadd.f32 %v832, 1.0
        %v889 = vadd.f32 %v834, 1.0
        %v890 = vadd.f32 %v836, 1.0
        %v891 = vadd.f32 %v838, 1.0
        %v892 = vadd.f32 %v840, 1.0
        %v893 = vadd.f32 %v842, 1.0
        %v894 = vadd.f32 %v844, 1.0
        %v895 = vadd.f32 %v846, 1.0
        %v896 = vadd.f32 %v848, 1.0
        %v897 = vadd.f32 %v850, 1.0
        %v898 = vadd.f32 %v852, 1.0
        %v899 = vadd.f32 %v854, 1.0
        %v900 = vadd.f32 %v856, 1.0
        %v901 = vadd.f32 %v858, 1.0
        %v902 = vadd.f32 %v860, 1.0
        %v903 = vadd.f32 %v862, 1.0
        %v904 = vadd.f32 %v864, 1.0
        %v905 = vadd.f32 %v866, 1.0
        %v906 = vadd.f32 %v868, 1.0
        %v907 = vadd.f32 %v870, 1.0
        %v908 = vadd.f32 %v872, 1.0
        %v909 = vadd.f32 %v874, 1.0
        %v910 = vadd.f32 %v876, 1.0
        %v911 = vadd.f32 %v878, 1.0
        %v912 = vadd.f32 %v880, 1.0
        %v913 = vrcp.pop %v881
        %v914 = vmul.f32 1.0, %v913
        %v915 = vrcp.pop %v882
        %v916 = vmul.f32 1.0, %v915
        %v917 = vrcp.pop %v883
        %v918 = vmul.f32 1.0, %v917
        %v919 = vrcp.pop %v884
        %v920 = vmul.f32 1.0, %v919
        %v921 = vrcp.pop %v885
        %v922 = vmul.f32 1.0, %v921
        %v923 = vrcp.pop %v886
        %v924 = vmul.f32 1.0, %v923
        %v925 = vrcp.pop %v887
        %v926 = vmul.f32 1.0, %v925
        %v927 = vrcp.pop %v888
        %v928 = vmul.f32 1.0, %v927
        %v929 = vrcp.pop %v889
        %v930 = vmul.f32 1.0, %v929
        %v931 = vrcp.pop %v890
        %v932 = vmul.f32 1.0, %v931
        %v933 = vrcp.pop %v891
        %v934 = vmul.f32 1.0, %v933
        %v935 = vrcp.pop %v892
        %v936 = vmul.f32 1.0, %v935
        %v937 = vrcp.pop %v893
        %v938 = vmul.f32 1.0, %v937
        %v939 = vrcp.pop %v894
        %v940 = vmul.f32 1.0, %v939
        %v941 = vrcp.pop %v895
        %v942 = vmul.f32 1.0, %v941
        %v943 = vrcp.pop %v896
        %v944 = vmul.f32 1.0, %v943
        %v945 = vrcp.pop %v897
        %v946 = vmul.f32 1.0, %v945
        %v947 = vrcp.pop %v898
        %v948 = vmul.f32 1.0, %v947
        %v949 = vrcp.pop %v899
        %v950 = vmul.f32 1.0, %v949
        %v951 = vrcp.pop %v900
        %v952 = vmul.f32 1.0, %v951
        %v953 = vrcp.pop %v901
        %v954 = vmul.f32 1.0, %v953
        %v955 = vrcp.pop %v902
        %v956 = vmul.f32 1.0, %v955
        %v957 = vrcp.pop %v903
        %v958 = vmul.f32 1.0, %v957
        %v959 = vrcp.pop %v904
        %v960 = vmul.f32 1.0, %v959
        %v961 = vrcp.pop %v905
        %v962 = vmul.f32 1.0, %v961
        %v963 = vrcp.pop %v906
        %v964 = vmul.f32 1.0, %v963
        %v965 = vrcp.pop %v907
        %v966 = vmul.f32 1.0, %v965
        %v967 = vrcp.pop %v908
        %v968 = vmul.f32 1.0, %v967
        %v969 = vrcp.pop %v909
        %v970 = vmul.f32 1.0, %v969
        %v971 = vrcp.pop %v910
        %v972 = vmul.f32 1.0, %v971
        %v973 = vrcp.pop %v911
        %v974 = vmul.f32 1.0, %v973
        %v975 = vrcp.pop %v912
        %v976 = vmul.f32 1.0, %v975
        %v977 = vmul.f32 %v594, %v914
        %v978 = vmul.f32 %v596, %v916
        %v979 = vmul.f32 %v598, %v918
        %v980 = vmul.f32 %v600, %v920
        %v981 = vmul.f32 %v604, %v922
        %v982 = vmul.f32 %v606, %v924
        %v983 = vmul.f32 %v608, %v926
        %v984 = vmul.f32 %v610, %v928
        %v985 = vmul.f32 %v614, %v930
        %v986 = vmul.f32 %v616, %v932
        %v987 = vmul.f32 %v618, %v934
        %v988 = vmul.f32 %v620, %v936
        %v989 = vmul.f32 %v624, %v938
        %v990 = vmul.f32 %v626, %v940
        %v991 = vmul.f32 %v628, %v942
        %v992 = vmul.f32 %v630, %v944
        %v993 = vmul.f32 %v634, %v946
        %v994 = vmul.f32 %v636, %v948
        %v995 = vmul.f32 %v638, %v950
        %v996 = vmul.f32 %v640, %v952
        %v997 = vmul.f32 %v644, %v954
        %v998 = vmul.f32 %v646, %v956
        %v999 = vmul.f32 %v648, %v958
        %v1000 = vmul.f32 %v650, %v960
        %v1001 = vmul.f32 %v654, %v962
        %v1002 = vmul.f32 %v656, %v964
        %v1003 = vmul.f32 %v658, %v966
        %v1004 = vmul.f32 %v660, %v968
        %v1005 = vmul.f32 %v664, %v970
        %v1006 = vmul.f32 %v666, %v972
        %v1007 = vmul.f32 %v668, %v974
        %v1008 = vmul.f32 %v670, %v976
        %v1009 = vmul.f32 %v977, %v707
        %v1010 = vmul.f32 %v978, %v709
        %v1011 = vmul.f32 %v979, %v711
        %v1012 = vmul.f32 %v980, %v713
        %v1013 = vmul.f32 %v981, %v717
        %v1014 = vmul.f32 %v982, %v719
        %v1015 = vmul.f32 %v983, %v721
        %v1016 = vmul.f32 %v984, %v723
        %v1017 = vmul.f32 %v985, %v727
        %v1018 = vmul.f32 %v986, %v729
        %v1019 = vmul.f32 %v987, %v731
        %v1020 = vmul.f32 %v988, %v733
        %v1021 = vmul.f32 %v989, %v737
        %v1022 = vmul.f32 %v990, %v739
        %v1023 = vmul.f32 %v991, %v741
        %v1024 = vmul.f32 %v992, %v743
        %v1025 = vmul.f32 %v993, %v747
        %v1026 = vmul.f32 %v994, %v749
        %v1027 = vmul.f32 %v995, %v751
        %v1028 = vmul.f32 %v996, %v753
        %v1029 = vmul.f32 %v997, %v757
        %v1030 = vmul.f32 %v998, %v759
        %v1031 = vmul.f32 %v999, %v761
        %v1032 = vmul.f32 %v1000, %v763
        %v1033 = vmul.f32 %v1001, %v767
        %v1034 = vmul.f32 %v1002, %v769
        %v1035 = vmul.f32 %v1003, %v771
        %v1036 = vmul.f32 %v1004, %v773
        %v1037 = vmul.f32 %v1005, %v777
        %v1038 = vmul.f32 %v1006, %v779
        %v1039 = vmul.f32 %v1007, %v781
        %v1040 = vmul.f32 %v1008, %v783
        %v1041 = vld [vmem:[#allocation2] sm:$0xff]
        %v1042 = vld [vmem:[#allocation2 + $0x8] sm:$0xff]
        %v1043 = vld [vmem:[#allocation2 + $0x10] sm:$0xff]
        %v1044 = vld [vmem:[#allocation2 + $0x18] sm:$0xff]
        %v1045 = vld [vmem:[#allocation2 + $0x20] sm:$0xff]
        %v1046 = vld [vmem:[#allocation2 + $0x28] sm:$0xff]
        %v1047 = vld [vmem:[#allocation2 + $0x30] sm:$0xff]
        %v1048 = vld [vmem:[#allocation2 + $0x38] sm:$0xff]
        %v1049 = vld [vmem:[#allocation2 + $0x40] sm:$0xff]
        %v1050 = vld [vmem:[#allocation2 + $0x48] sm:$0xff]
        %v1051 = vld [vmem:[#allocation2 + $0x50] sm:$0xff]
        %v1052 = vld [vmem:[#allocation2 + $0x58] sm:$0xff]
        %v1053 = vld [vmem:[#allocation2 + $0x60] sm:$0xff]
        %v1054 = vld [vmem:[#allocation2 + $0x68] sm:$0xff]
        %v1055 = vld [vmem:[#allocation2 + $0x70] sm:$0xff]
        %v1056 = vld [vmem:[#allocation2 + $0x78] sm:$0xff]
        %v1057 = vpack.c.bf16 %v1011, %v1009
        %v1058 = vpack.c.bf16 %v1012, %v1010
        %v1059 = vpack.c.bf16 %v1015, %v1013
        %v1060 = vpack.c.bf16 %v1016, %v1014
        %v1061 = vpack.c.bf16 %v1019, %v1017
        %v1062 = vpack.c.bf16 %v1020, %v1018
        %v1063 = vpack.c.bf16 %v1023, %v1021
        %v1064 = vpack.c.bf16 %v1024, %v1022
        %v1065 = vpack.c.bf16 %v1027, %v1025
        %v1066 = vpack.c.bf16 %v1028, %v1026
        %v1067 = vpack.c.bf16 %v1031, %v1029
        %v1068 = vpack.c.bf16 %v1032, %v1030
        %v1069 = vpack.c.bf16 %v1035, %v1033
        %v1070 = vpack.c.bf16 %v1036, %v1034
        %v1071 = vpack.c.bf16 %v1039, %v1037
        %v1072 = vpack.c.bf16 %v1040, %v1038
        %v1073 = vld [vmem:[%s245] sm:$0xf]
        %v1074 = vld [vmem:[%s245 + $0x4] sm:$0xf]
        %v1075 = vld [vmem:[%s245 + $0x8] sm:$0xf]
        %v1076 = vld [vmem:[%s245 + $0xc] sm:$0xf]
        %v1077 = vld [vmem:[%s245 + $0x10] sm:$0xf]
        %v1078 = vld [vmem:[%s245 + $0x14] sm:$0xf]
        %v1079 = vld [vmem:[%s245 + $0x18] sm:$0xf]
        %v1080 = vld [vmem:[%s245 + $0x1c] sm:$0xf]
        %v1081 = vld [vmem:[%s245 + $0x20] sm:$0xf]
        %v1082 = vld [vmem:[%s245 + $0x24] sm:$0xf]
        %v1083 = vld [vmem:[%s245 + $0x28] sm:$0xf]
        %v1084 = vld [vmem:[%s245 + $0x2c] sm:$0xf]
        %v1085 = vld [vmem:[%s245 + $0x30] sm:$0xf]
        %v1086 = vld [vmem:[%s245 + $0x34] sm:$0xf]
        %v1087 = vld [vmem:[%s245 + $0x38] sm:$0xf]
        %v1088 = vld [vmem:[%s245 + $0x3c] sm:$0xf]
        %v1089 = vld [vmem:[%s245 + $0x40] sm:$0xf]
        %v1090 = vld [vmem:[%s245 + $0x44] sm:$0xf]
        %v1091 = vld [vmem:[%s245 + $0x48] sm:$0xf]
        %v1092 = vld [vmem:[%s245 + $0x4c] sm:$0xf]
        %v1093 = vld [vmem:[%s245 + $0x50] sm:$0xf]
        %v1094 = vld [vmem:[%s245 + $0x54] sm:$0xf]
        %v1095 = vld [vmem:[%s245 + $0x58] sm:$0xf]
        %v1096 = vld [vmem:[%s245 + $0x5c] sm:$0xf]
        %v1097 = vld [vmem:[%s245 + $0x60] sm:$0xf]
        %v1098 = vld [vmem:[%s245 + $0x64] sm:$0xf]
        %v1099 = vld [vmem:[%s245 + $0x68] sm:$0xf]
        %v1100 = vld [vmem:[%s245 + $0x6c] sm:$0xf]
        %v1101 = vld [vmem:[%s245 + $0x70] sm:$0xf]
        %v1102 = vld [vmem:[%s245 + $0x74] sm:$0xf]
        %v1103 = vld [vmem:[%s245 + $0x78] sm:$0xf]
        %v1104 = vld [vmem:[%s245 + $0x7c] sm:$0xf]
        %v1137 = vunpack.c.l.b16 %v1073
        %v1138 = vunpack.c.l.b16 %v1074
        %v1139 = vunpack.c.l.b16 %v1075
        %v1140 = vunpack.c.l.b16 %v1076
        %v1141 = vunpack.c.l.b16 %v1077
        %v1142 = vunpack.c.l.b16 %v1078
        %v1143 = vunpack.c.l.b16 %v1079
        %v1144 = vunpack.c.l.b16 %v1080
        %v1145 = vunpack.c.l.b16 %v1081
        %v1146 = vunpack.c.l.b16 %v1082
        %v1147 = vunpack.c.l.b16 %v1083
        %v1148 = vunpack.c.l.b16 %v1084
        %v1149 = vunpack.c.l.b16 %v1085
        %v1150 = vunpack.c.l.b16 %v1086
        %v1151 = vunpack.c.l.b16 %v1087
        %v1152 = vunpack.c.l.b16 %v1088
        %v1153 = vunpack.c.l.b16 %v1089
        %v1154 = vunpack.c.l.b16 %v1090
        %v1155 = vunpack.c.l.b16 %v1091
        %v1156 = vunpack.c.l.b16 %v1092
        %v1157 = vunpack.c.l.b16 %v1093
        %v1158 = vunpack.c.l.b16 %v1094
        %v1159 = vunpack.c.l.b16 %v1095
        %v1160 = vunpack.c.l.b16 %v1096
        %v1161 = vunpack.c.l.b16 %v1097
        %v1162 = vunpack.c.l.b16 %v1098
        %v1163 = vunpack.c.l.b16 %v1099
        %v1164 = vunpack.c.l.b16 %v1100
        %v1165 = vunpack.c.l.b16 %v1101
        %v1166 = vunpack.c.l.b16 %v1102
        %v1167 = vunpack.c.l.b16 %v1103
        %v1168 = vunpack.c.l.b16 %v1104
        %v1169 = vpack.c.b16 %v1138, %v1137
        %v1170 = vpack.c.b16 %v1140, %v1139
        %v1171 = vpack.c.b16 %v1142, %v1141
        %v1172 = vpack.c.b16 %v1144, %v1143
        %v1173 = vpack.c.b16 %v1146, %v1145
        %v1174 = vpack.c.b16 %v1148, %v1147
        %v1175 = vpack.c.b16 %v1150, %v1149
        %v1176 = vpack.c.b16 %v1152, %v1151
        %v1177 = vpack.c.b16 %v1154, %v1153
        %v1178 = vpack.c.b16 %v1156, %v1155
        %v1179 = vpack.c.b16 %v1158, %v1157
        %v1180 = vpack.c.b16 %v1160, %v1159
        %v1181 = vpack.c.b16 %v1162, %v1161
        %v1182 = vpack.c.b16 %v1164, %v1163
        %v1183 = vpack.c.b16 %v1166, %v1165
        %v1184 = vpack.c.b16 %v1168, %v1167
        %1201 = vmatprep.subr.bf16.mxu0 0
        %1202 = vmatpush1.bf16.msra.mxu0 %v1169
        %1203 = vmatprep.subr.bf16.mxu0 0
        %1204 = vmatpush1.bf16.msra.mxu0 %v1170
        %1205 = vmatprep.subr.bf16.mxu0 0
        %1206 = vmatpush1.bf16.msra.mxu0 %v1171
        %1207 = vmatprep.subr.bf16.mxu0 0
        %1208 = vmatpush1.bf16.msra.mxu0 %v1172
        %1209 = vmatprep.subr.bf16.mxu0 0
        %1210 = vmatpush1.bf16.msra.mxu0 %v1173
        %1211 = vmatprep.subr.bf16.mxu0 0
        %1212 = vmatpush1.bf16.msra.mxu0 %v1174
        %1213 = vmatprep.subr.bf16.mxu0 0
        %1214 = vmatpush1.bf16.msra.mxu0 %v1175
        %1215 = vmatprep.subr.bf16.mxu0 0
        %1216 = vmatpush1.bf16.msra.mxu0 %v1176
        %1217 = vmatprep.subr.bf16.mxu0 0
        %1218 = vmatpush1.bf16.msra.mxu0 %v1177
        %1219 = vmatprep.subr.bf16.mxu0 0
        %1220 = vmatpush1.bf16.msra.mxu0 %v1178
        %1221 = vmatprep.subr.bf16.mxu0 0
        %1222 = vmatpush1.bf16.msra.mxu0 %v1179
        %1223 = vmatprep.subr.bf16.mxu0 0
        %1224 = vmatpush1.bf16.msra.mxu0 %v1180
        %1225 = vmatprep.subr.bf16.mxu0 0
        %1226 = vmatpush1.bf16.msra.mxu0 %v1181
        %1227 = vmatprep.subr.bf16.mxu0 0
        %1228 = vmatpush1.bf16.msra.mxu0 %v1182
        %1229 = vmatprep.subr.bf16.mxu0 0
        %1230 = vmatpush1.bf16.msra.mxu0 %v1183
        %1231 = vmatprep.subr.bf16.mxu0 0
        %1232 = vmatpush1.bf16.msra.mxu0 %v1184
        %1233 = vmatprep.mubr.bf16.mxu0 %v1058
        %1234 = vmatmul.mubr.bf16.gmra.mrb[0].mxu0 %v1057
        %v1235 = vpop.f32.mrb[0].mxu0
        %v1236 = vadd.f32 0.0, %v1235
        %v1237 = vpop.f32.mrb[0].mxu0
        %v1238 = vpop.f32.mrb[0].mxu0
        %v1239 = vadd.f32 0.0, %v1238
        %v1240 = vpop.f32.mrb[0].mxu0
        %1241 = vmatprep.mubr.bf16.mxu0 %v1060
        %1242 = vmatmul.mubr.bf16.gmra.mrb[0].mxu0 %v1059
        %v1243 = vpop.f32.mrb[0].mxu0
        %v1244 = vadd.f32 0.0, %v1243
        %v1245 = vpop.f32.mrb[0].mxu0
        %v1246 = vpop.f32.mrb[0].mxu0
        %v1247 = vadd.f32 0.0, %v1246
        %v1248 = vpop.f32.mrb[0].mxu0
        %1249 = vmatprep.mubr.bf16.mxu0 %v1062
        %1250 = vmatmul.mubr.bf16.gmra.mrb[0].mxu0 %v1061
        %v1251 = vpop.f32.mrb[0].mxu0
        %v1252 = vadd.f32 0.0, %v1251
        %v1253 = vpop.f32.mrb[0].mxu0
        %v1254 = vpop.f32.mrb[0].mxu0
        %v1255 = vadd.f32 0.0, %v1254
        %v1256 = vpop.f32.mrb[0].mxu0
        %1257 = vmatprep.mubr.bf16.mxu0 %v1064
        %1258 = vmatmul.mubr.bf16.gmra.mrb[0].mxu0 %v1063
        %v1259 = vpop.f32.mrb[0].mxu0
        %v1260 = vadd.f32 0.0, %v1259
        %v1261 = vpop.f32.mrb[0].mxu0
        %v1262 = vpop.f32.mrb[0].mxu0
        %v1263 = vadd.f32 0.0, %v1262
        %v1264 = vpop.f32.mrb[0].mxu0
        %1265 = vmatprep.mubr.bf16.mxu0 %v1066
        %1266 = vmatmul.mubr.bf16.gmra.mrb[0].mxu0 %v1065
        %v1267 = vpop.f32.mrb[0].mxu0
        %v1268 = vadd.f32 0.0, %v1267
        %v1269 = vpop.f32.mrb[0].mxu0
        %v1270 = vpop.f32.mrb[0].mxu0
        %v1271 = vadd.f32 0.0, %v1270
        %v1272 = vpop.f32.mrb[0].mxu0
        %1273 = vmatprep.mubr.bf16.mxu0 %v1068
        %1274 = vmatmul.mubr.bf16.gmra.mrb[0].mxu0 %v1067
        %v1275 = vpop.f32.mrb[0].mxu0
        %v1276 = vadd.f32 0.0, %v1275
        %v1277 = vpop.f32.mrb[0].mxu0
        %v1278 = vpop.f32.mrb[0].mxu0
        %v1279 = vadd.f32 0.0, %v1278
        %v1280 = vpop.f32.mrb[0].mxu0
        %1281 = vmatprep.mubr.bf16.mxu0 %v1070
        %1282 = vmatmul.mubr.bf16.gmra.mrb[0].mxu0 %v1069
        %v1283 = vpop.f32.mrb[0].mxu0
        %v1284 = vadd.f32 0.0, %v1283
        %v1285 = vpop.f32.mrb[0].mxu0
        %v1286 = vpop.f32.mrb[0].mxu0
        %v1287 = vadd.f32 0.0, %v1286
        %v1288 = vpop.f32.mrb[0].mxu0
        %1289 = vmatprep.mubr.bf16.mxu0 %v1072
        %1290 = vmatmul.mubr.bf16.gmra.mrb[0].mxu0 %v1071
        %v1291 = vpop.f32.mrb[0].mxu0
        %v1292 = vadd.f32 0.0, %v1291
        %v1293 = vpop.f32.mrb[0].mxu0
        %v1294 = vpop.f32.mrb[0].mxu0
        %v1295 = vadd.f32 0.0, %v1294
        %v1296 = vpop.f32.mrb[0].mxu0
        %1297 = vdwg.mxu0
        %v1298 = vadd.f32 %v1041, %v1236
        %v1299 = vadd.f32 %v1042, %v1239
        %v1300 = vadd.f32 %v1043, %v1244
        %v1301 = vadd.f32 %v1044, %v1247
        %v1302 = vadd.f32 %v1045, %v1252
        %v1303 = vadd.f32 %v1046, %v1255
        %v1304 = vadd.f32 %v1047, %v1260
        %v1305 = vadd.f32 %v1048, %v1263
        %v1306 = vadd.f32 %v1049, %v1268
        %v1307 = vadd.f32 %v1050, %v1271
        %v1308 = vadd.f32 %v1051, %v1276
        %v1309 = vadd.f32 %v1052, %v1279
        %v1310 = vadd.f32 %v1053, %v1284
        %v1311 = vadd.f32 %v1054, %v1287
        %v1312 = vadd.f32 %v1055, %v1292
        %v1313 = vadd.f32 %v1056, %v1295
        %1314 = vst [vmem:[#allocation2] sm:$0xff] %v1298
        %1315 = vst [vmem:[#allocation2 + $0x8] sm:$0xff] %v1299
        %1316 = vst [vmem:[#allocation2 + $0x10] sm:$0xff] %v1300
        %1317 = vst [vmem:[#allocation2 + $0x18] sm:$0xff] %v1301
        %1318 = vst [vmem:[#allocation2 + $0x20] sm:$0xff] %v1302
        %1319 = vst [vmem:[#allocation2 + $0x28] sm:$0xff] %v1303
        %1320 = vst [vmem:[#allocation2 + $0x30] sm:$0xff] %v1304
        %1321 = vst [vmem:[#allocation2 + $0x38] sm:$0xff] %v1305
        %1322 = vst [vmem:[#allocation2 + $0x40] sm:$0xff] %v1306
        %1323 = vst [vmem:[#allocation2 + $0x48] sm:$0xff] %v1307
        %1324 = vst [vmem:[#allocation2 + $0x50] sm:$0xff] %v1308
        %1325 = vst [vmem:[#allocation2 + $0x58] sm:$0xff] %v1309
        %1326 = vst [vmem:[#allocation2 + $0x60] sm:$0xff] %v1310
        %1327 = vst [vmem:[#allocation2 + $0x68] sm:$0xff] %v1311
        %1328 = vst [vmem:[#allocation2 + $0x70] sm:$0xff] %v1312
        %1329 = vst [vmem:[#allocation2 + $0x78] sm:$0xff] %v1313
        %p1330 = scmp.eq.s32.totalorder %s28, 1
        // Predicated region
        $region49: #{tpu_custom_call.1} parent=31 // pred_check
          %p1331 = pneg %p1330
        $region50: #{tpu_custom_call.1} parent=31 // pred_check_branch
          %1333 = sbr.rel (%p1331) target = $region52
        $region51: #{tpu_custom_call.1} parent=31 // pred_region
          %v1334 = vld [vmem:[#allocation2] sm:$0xff]
          %v1335 = vld [vmem:[#allocation2 + $0x8] sm:$0xff]
          %v1336 = vld [vmem:[#allocation2 + $0x10] sm:$0xff]
          %v1337 = vld [vmem:[#allocation2 + $0x18] sm:$0xff]
          %v1338 = vld [vmem:[#allocation2 + $0x20] sm:$0xff]
          %v1339 = vld [vmem:[#allocation2 + $0x28] sm:$0xff]
          %v1340 = vld [vmem:[#allocation2 + $0x30] sm:$0xff]
          %v1341 = vld [vmem:[#allocation2 + $0x38] sm:$0xff]
          %v1342 = vld [vmem:[#allocation2 + $0x40] sm:$0xff]
          %v1343 = vld [vmem:[#allocation2 + $0x48] sm:$0xff]
          %v1344 = vld [vmem:[#allocation2 + $0x50] sm:$0xff]
          %v1345 = vld [vmem:[#allocation2 + $0x58] sm:$0xff]
          %v1346 = vld [vmem:[#allocation2 + $0x60] sm:$0xff]
          %v1347 = vld [vmem:[#allocation2 + $0x68] sm:$0xff]
          %v1348 = vld [vmem:[#allocation2 + $0x70] sm:$0xff]
          %v1349 = vld [vmem:[#allocation2 + $0x78] sm:$0xff]
          %v1350 = vpack.c.bf16 %v1335, %v1334
          %v1351 = vpack.c.bf16 %v1337, %v1336
          %v1352 = vpack.c.bf16 %v1339, %v1338
          %v1353 = vpack.c.bf16 %v1341, %v1340
          %v1354 = vpack.c.bf16 %v1343, %v1342
          %v1355 = vpack.c.bf16 %v1345, %v1344
          %v1356 = vpack.c.bf16 %v1347, %v1346
          %v1357 = vpack.c.bf16 %v1349, %v1348
          %v1366 = vunpack.c.l.b16 %v1350
          %v1367 = vunpack.c.h.b16 %v1350
          %v1368 = vunpack.c.l.b16 %v1351
          %v1369 = vunpack.c.h.b16 %v1351
          %v1370 = vunpack.c.l.b16 %v1352
          %v1371 = vunpack.c.h.b16 %v1352
          %v1372 = vunpack.c.l.b16 %v1353
          %v1373 = vunpack.c.h.b16 %v1353
          %v1374 = vunpack.c.l.b16 %v1354
          %v1375 = vunpack.c.h.b16 %v1354
          %v1376 = vunpack.c.l.b16 %v1355
          %v1377 = vunpack.c.h.b16 %v1355
          %v1378 = vunpack.c.l.b16 %v1356
          %v1379 = vunpack.c.h.b16 %v1356
          %v1380 = vunpack.c.l.b16 %v1357
          %v1381 = vunpack.c.h.b16 %v1357
          %v1382 = vpack.c.b16 %v1366, %v1366
          %v1383 = vpack.c.b16 %v1367, %v1367
          %v1384 = vpack.c.b16 %v1368, %v1368
          %v1385 = vpack.c.b16 %v1369, %v1369
          %v1386 = vpack.c.b16 %v1370, %v1370
          %v1387 = vpack.c.b16 %v1371, %v1371
          %v1388 = vpack.c.b16 %v1372, %v1372
          %v1389 = vpack.c.b16 %v1373, %v1373
          %v1390 = vpack.c.b16 %v1374, %v1374
          %v1391 = vpack.c.b16 %v1375, %v1375
          %v1392 = vpack.c.b16 %v1376, %v1376
          %v1393 = vpack.c.b16 %v1377, %v1377
          %v1394 = vpack.c.b16 %v1378, %v1378
          %v1395 = vpack.c.b16 %v1379, %v1379
          %v1396 = vpack.c.b16 %v1380, %v1380
          %v1397 = vpack.c.b16 %v1381, %v1381
          %1414 = vst [vmem:[%s277] sm:$0xf] %v1382
          %1415 = vst [vmem:[%s277 + $0x4] sm:$0xf] %v1383
          %1416 = vst [vmem:[%s277 + $0x8] sm:$0xf] %v1384
          %1417 = vst [vmem:[%s277 + $0xc] sm:$0xf] %v1385
          %1418 = vst [vmem:[%s277 + $0x10] sm:$0xf] %v1386
          %1419 = vst [vmem:[%s277 + $0x14] sm:$0xf] %v1387
          %1420 = vst [vmem:[%s277 + $0x18] sm:$0xf] %v1388
          %1421 = vst [vmem:[%s277 + $0x1c] sm:$0xf] %v1389
          %1422 = vst [vmem:[%s277 + $0x20] sm:$0xf] %v1390
          %1423 = vst [vmem:[%s277 + $0x24] sm:$0xf] %v1391
          %1424 = vst [vmem:[%s277 + $0x28] sm:$0xf] %v1392
          %1425 = vst [vmem:[%s277 + $0x2c] sm:$0xf] %v1393
          %1426 = vst [vmem:[%s277 + $0x30] sm:$0xf] %v1394
          %1427 = vst [vmem:[%s277 + $0x34] sm:$0xf] %v1395
          %1428 = vst [vmem:[%s277 + $0x38] sm:$0xf] %v1396
          %1429 = vst [vmem:[%s277 + $0x3c] sm:$0xf] %v1397
        $region52: #{tpu_custom_call.1} parent=31 // pred_fallthru
          _
        %s1430 = sand.u32 %s121, 1
        %s1431 = scalar_lea.sflag [#allocation5], %s1430
        %s1432 = sand.u32 %s121, 1
        %s1433 = smul.addr %s1432, 64
        %s1434 = scalar_lea.vmem [#allocation9], %s1433
        // Predicated region
        $region53: #{tpu_custom_call.1} parent=31 // pred_check
          %p1435 = pneg %p131
        $region54: #{tpu_custom_call.1} parent=31 // pred_check_branch
          %1437 = sbr.rel (%p1435) target = $region56
        $region55: #{tpu_custom_call.1} parent=31 // pred_region
          %s1438 = smul.u32 16, %s27
          %s1440 = ssub.s32 1024, 1024
          %1441 = vsyncadd %s1431, %s1440
          %s1442 = smul.addr %s1438, 64
          %s1443 = scalar_lea.hbm %s3, %s1442
          %s1444 = sshll.u32 %s1434, 4
          %s1445 = int_to_ptr.vmem [resolvable:$true] %s1444
          %1450 = dma.vmem_to_hbm [thread:$0]  %s1445, 1024, %s1443, %s1431, 64, 64, 4
        $region56: #{tpu_custom_call.1} parent=31 // pred_fallthru
          _
      $region32: #{tpu_custom_call.1} parent=5 // pred_fallthru
        _
      %p1451 = scmp.le.s32.totalorder 2, %s18
      // Predicated region
      $region57: #{tpu_custom_call.1} parent=5 // pred_check
        %p1452 = pneg %p1451
      $region58: #{tpu_custom_call.1} parent=5 // pred_check_branch
        %1454 = sbr.rel (%p1452) target = $region60
      $region59: #{tpu_custom_call.1} parent=5 // pred_region
        %s1455 = ssub.s32 %s18, 2
        // Predicated region
        $region61: #{tpu_custom_call.1} parent=59 // pred_check
          %p1456 = pneg %p137
        $region62: #{tpu_custom_call.1} parent=59 // pred_check_branch
          %1458 = sbr.rel (%p1456) target = $region64
        $region63: #{tpu_custom_call.1} parent=59 // pred_region
          %s1459 = sand.u32 %s122, 1
          %s1460 = scalar_lea.sflag [#allocation5], %s1459
          %s1461 = sand.u32 %s122, 1
          %s1462 = smul.addr %s1461, 64
          %s1463 = scalar_lea.vmem [#allocation9], %s1462
          %1464 = dma.done %s1460, 1024
        $region64: #{tpu_custom_call.1} parent=59 // pred_fallthru
          _
      $region60: #{tpu_custom_call.1} parent=5 // pred_fallthru
        _
    $region6: #{tpu_custom_call.1} parent=1 // loop_footer
      %s22 = sadd.s32 1, %s18
    $region7: #{tpu_custom_call.1} parent=1 // loop_footer_branch
      %17 = sbr.rel target = $region3
    $region8: #{tpu_custom_call.1} parent=1 // loop_exit
      _
    %1465 = vsyncpa [#allocation4], 1
    %s1466 = scalar_lea.sflag [#allocation4], 1
    %1467 = vsyncpa %s1466, 1
    %1468 = vsyncpa [#allocation7], 1
    %s1469 = scalar_lea.sflag [#allocation7], 1
    %1470 = vsyncpa %s1469, 1
    %1471 = vsyncpa [#allocation5], 1
    %s1472 = scalar_lea.sflag [#allocation5], 1
    %1473 = vsyncpa %s1472, 1

</llo_original>
